<compile_context>
chip_gen: v6e
topology: v6e:2x2x1
jax: 0.10.0
libtpu: 0.0.40
codegen_flags: <defaults>
</compile_context>

<pallas_src>
import functools
import math

import numpy as np
import jax
import jax.numpy as jnp
from jax.experimental import pallas as pl
from jax.experimental.pallas import tpu as pltpu


# ----------------------------------------------------------------------------
# helpers
# ----------------------------------------------------------------------------

def _row_tile(m):
    """Row tile: one block when small, 256-row parallel tiles when large."""
    if m > 256 and m % 256 == 0:
        return 256
    return m


def _layernorm(x, gamma, beta, eps):
    mu = jnp.mean(x, axis=-1, keepdims=True)
    var = jnp.mean((x - mu) ** 2, axis=-1, keepdims=True)
    return (x - mu) * jax.lax.rsqrt(var + eps) * gamma + beta


def _gelu(x):
    # exact (erf) GELU, matching HF ACT2FN["gelu"]
    return 0.5 * x * (1.0 + jax.lax.erf(x * (1.0 / math.sqrt(2.0))))


_BF16 = jnp.bfloat16
_DN_T = (((1,), (1,)), ((), ()))   # contract last dims: A @ B^T


# ----------------------------------------------------------------------------
# Pallas kernels
# ----------------------------------------------------------------------------

def _ln_mask_kernel(x_ref, g_ref, b_ref, m_ref, o_ref, *, eps):
    """LayerNorm over the hidden dim, then row-mask multiply (embedding path)."""
    y = _layernorm(x_ref[...], g_ref[...], b_ref[...], eps)
    o_ref[...] = y * m_ref[...]


def layernorm_mask(x, gamma, beta, mask_col, eps):
    M, D = x.shape
    tm = _row_tile(M)
    return pl.pallas_call(
        functools.partial(_ln_mask_kernel, eps=eps),
        out_shape=jax.ShapeDtypeStruct((M, D), jnp.float32),
        grid=(M // tm,),
        in_specs=[pl.BlockSpec((tm, D), lambda i: (i, 0)),
                  pl.BlockSpec((1, D), lambda i: (0, 0)),
                  pl.BlockSpec((1, D), lambda i: (0, 0)),
                  pl.BlockSpec((tm, 1), lambda i: (i, 0))],
        out_specs=pl.BlockSpec((tm, D), lambda i: (i, 0)),
        compiler_params=pltpu.CompilerParams(dimension_semantics=("parallel",)),
    )(x, gamma.reshape(1, D), beta.reshape(1, D), mask_col)


def _ln_matmul_kernel(x_ref, g_ref, b_ref, w_ref, bias_ref, o_ref, *, eps):
    """Fused rel-embedding LayerNorm + projection (all layers' pos_q|pos_k at once)."""
    y = _layernorm(x_ref[...], g_ref[...], b_ref[...], eps)
    o_ref[...] = (jnp.dot(y.astype(_BF16), w_ref[...].astype(_BF16),
                          preferred_element_type=jnp.float32) + bias_ref[...])


def rel_pos_projection(rel_emb, gamma, beta, w, bias, eps):
    R, D = rel_emb.shape
    N = w.shape[1]
    return pl.pallas_call(
        functools.partial(_ln_matmul_kernel, eps=eps),
        out_shape=jax.ShapeDtypeStruct((R, N), jnp.float32),
        grid=(1,),
        in_specs=[pl.BlockSpec((R, D), lambda i: (0, 0)),
                  pl.BlockSpec((1, D), lambda i: (0, 0)),
                  pl.BlockSpec((1, D), lambda i: (0, 0)),
                  pl.BlockSpec((D, N), lambda i: (0, 0)),
                  pl.BlockSpec((1, N), lambda i: (0, 0))],
        out_specs=pl.BlockSpec((R, N), lambda i: (0, 0)),
    )(rel_emb, gamma.reshape(1, D), beta.reshape(1, D), w, bias.reshape(1, N))


def _attn_block_kernel(x_ref, wqkv_ref, bqkv_ref, pos_ref, selc_ref, selp_ref,
                       mrow_ref, mcol_ref, wo_ref, bo_ref, g_ref, b_ref, o_ref,
                       *, heads, d_head, inv_scale, eps):
    """Fused per-batch attention block:
       QKV proj -> disentangled bias -> XSoftmax -> P@V -> out proj -> +res -> LN."""
    D = heads * d_head
    x = x_ref[0]                                             # (S, D) f32
    S = x.shape[0]

    # QKV projection (single concatenated weight), bf16 operands / f32 accum
    qkv = jnp.dot(x.astype(_BF16), wqkv_ref[...].astype(_BF16),
                  preferred_element_type=jnp.float32) + bqkv_ref[...]   # (S, 3D)
    pos = pos_ref[...]                                       # (2*span, 2D) = [pos_q|pos_k]
    two_span = pos.shape[0]
    selc = selc_ref[...]                                     # (2*span, S, S) static 0/1
    selp = selp_ref[...]

    # pairwise validity mask built in-kernel from the 1-D token mask (no HBM (B*H,S,S))
    mrow = mrow_ref[0]                                       # (1, S)
    mcol = mcol_ref[0]                                       # (S, 1)
    valid = (mcol * mrow) > 0.5                              # (S, S)
    neg = jnp.finfo(jnp.float32).min

    wo = wo_ref[...]                                         # (D, D)
    acc = jnp.zeros((S, D), jnp.float32)

    for h in range(heads):                                   # unrolled, H small
        lo, hi = h * d_head, (h + 1) * d_head
        qh = qkv[:, lo:hi].astype(_BF16)                     # (S, Dh)
        kh = qkv[:, D + lo:D + hi].astype(_BF16)
        vh = qkv[:, 2 * D + lo:2 * D + hi].astype(_BF16)
        pqh = pos[:, lo:hi].astype(_BF16)                    # (2*span, Dh)
        pkh = pos[:, D + lo:D + hi].astype(_BF16)

        # content->content scores and disentangled position scores
        scores = jax.lax.dot_general(qh, kh, _DN_T,
                                     preferred_element_type=jnp.float32)   # (S, S)
        c2p_att = jax.lax.dot_general(qh, pkh, _DN_T,
                                      preferred_element_type=jnp.float32)  # (S, 2*span)[i,m]
        p2c_att_t = jax.lax.dot_general(pqh, kh, _DN_T,
                                        preferred_element_type=jnp.float32)  # (2*span, S)[m,j]

        # static-index gather expressed as 0/1 selection (pure VPU, no take/transpose):
        #   bias_c2p[i,j] = q_i . pos_k[c2p_idx[i,j]],  bias_p2c[i,j] = k_j . pos_q[p2c_idx[j,i]]
        bias = jnp.zeros((S, S), jnp.float32)
        for m in range(two_span):
            bias = bias + selc[m] * c2p_att[:, m:m + 1] + selp[m] * p2c_att_t[m:m + 1, :]

        s = (scores + bias) * inv_scale
        s = jnp.where(valid, s, neg)                         # XSoftmax masked_fill(min)
        s = s - jnp.max(s, axis=-1, keepdims=True)
        e = jnp.exp(s)
        p = e * pl.reciprocal(jnp.sum(e, axis=-1, keepdims=True), approx=True)
        p = jnp.where(valid, p, 0.0)                         # XSoftmax: zero masked probs

        ctx_h = jnp.dot(p.astype(_BF16), vh, preferred_element_type=jnp.float32)
        # fold the per-head concat directly into the output projection:
        acc = acc + jnp.dot(ctx_h.astype(_BF16), wo[lo:hi, :].astype(_BF16),
                            preferred_element_type=jnp.float32)

    y = acc + bo_ref[...] + x                                # out proj bias + residual
    o_ref[0] = _layernorm(y, g_ref[...], b_ref[...], eps)


def attention_block(x, wqkv, bqkv, pos, selc, selp, mask_row3, mask_col3,
                    wo, bo, gamma, beta, *, heads, inv_scale, eps):
    B, S, D = x.shape
    two_span = pos.shape[0]
    return pl.pallas_call(
        functools.partial(_attn_block_kernel, heads=heads, d_head=D // heads,
                          inv_scale=inv_scale, eps=eps),
        out_shape=jax.ShapeDtypeStruct((B, S, D), jnp.float32),
        grid=(B,),
        in_specs=[pl.BlockSpec((1, S, D), lambda b: (b, 0, 0)),
                  pl.BlockSpec((D, 3 * D), lambda b: (0, 0)),
                  pl.BlockSpec((1, 3 * D), lambda b: (0, 0)),
                  pl.BlockSpec((two_span, 2 * D), lambda b: (0, 0)),
                  pl.BlockSpec((two_span, S, S), lambda b: (0, 0, 0)),
                  pl.BlockSpec((two_span, S, S), lambda b: (0, 0, 0)),
                  pl.BlockSpec((1, 1, S), lambda b: (b, 0, 0)),
                  pl.BlockSpec((1, S, 1), lambda b: (b, 0, 0)),
                  pl.BlockSpec((D, D), lambda b: (0, 0)),
                  pl.BlockSpec((1, D), lambda b: (0, 0)),
                  pl.BlockSpec((1, D), lambda b: (0, 0)),
                  pl.BlockSpec((1, D), lambda b: (0, 0))],
        out_specs=pl.BlockSpec((1, S, D), lambda b: (b, 0, 0)),
        compiler_params=pltpu.CompilerParams(dimension_semantics=("parallel",)),
    )(x, wqkv, bqkv.reshape(1, 3 * D), pos, selc, selp, mask_row3, mask_col3,
      wo, bo.reshape(1, D), gamma.reshape(1, D), beta.reshape(1, D))


def _ffn_block_kernel(x_ref, wi_ref, bi_ref, wo_ref, bo_ref, g_ref, b_ref, o_ref, *, eps):
    """Fused FFN: matmul + GELU + matmul + residual + LayerNorm."""
    x = x_ref[...]
    h = jnp.dot(x.astype(_BF16), wi_ref[...].astype(_BF16),
                preferred_element_type=jnp.float32) + bi_ref[...]
    h = _gelu(h)
    y = jnp.dot(h.astype(_BF16), wo_ref[...].astype(_BF16),
                preferred_element_type=jnp.float32) + bo_ref[...] + x
    o_ref[...] = _layernorm(y, g_ref[...], b_ref[...], eps)


def ffn_block(x, wi, bi, wo2, bo2, gamma, beta, eps):
    M, D = x.shape
    I = wi.shape[1]
    tm = _row_tile(M)
    return pl.pallas_call(
        functools.partial(_ffn_block_kernel, eps=eps),
        out_shape=jax.ShapeDtypeStruct((M, D), jnp.float32),
        grid=(M // tm,),
        in_specs=[pl.BlockSpec((tm, D), lambda i: (i, 0)),
                  pl.BlockSpec((D, I), lambda i: (0, 0)),
                  pl.BlockSpec((1, I), lambda i: (0, 0)),
                  pl.BlockSpec((I, D), lambda i: (0, 0)),
                  pl.BlockSpec((1, D), lambda i: (0, 0)),
                  pl.BlockSpec((1, D), lambda i: (0, 0)),
                  pl.BlockSpec((1, D), lambda i: (0, 0))],
        out_specs=pl.BlockSpec((tm, D), lambda i: (i, 0)),
        compiler_params=pltpu.CompilerParams(dimension_semantics=("parallel",)),
    )(x, wi, bi.reshape(1, I), wo2, bo2.reshape(1, D),
      gamma.reshape(1, D), beta.reshape(1, D))


def _pool_kernel(h_ref, m_ref, o_ref):
    h = h_ref[...]                              # (B, S, D)
    m = m_ref[...]                              # (B, S)
    num = jnp.sum(h * m[:, :, None], axis=1)    # (B, D)
    den = jnp.sum(m, axis=1, keepdims=True)     # (B, 1)
    o_ref[...] = num * pl.reciprocal(jnp.maximum(den, 1.0))   # guard all-pad rows


def masked_mean_pool(h, mask):
    B, S, D = h.shape
    return pl.pallas_call(
        _pool_kernel,
        out_shape=jax.ShapeDtypeStruct((B, D), jnp.float32),
        grid=(1,),
        in_specs=[pl.BlockSpec((B, S, D), lambda i: (0, 0, 0)),
                  pl.BlockSpec((B, S), lambda i: (0, 0))],
        out_specs=pl.BlockSpec((B, D), lambda i: (0, 0)),
    )(h, mask)


# ----------------------------------------------------------------------------
# DeBERTa-v2/v3 relative-position helpers (static, host-side numpy)
# ----------------------------------------------------------------------------

def make_log_bucket_position(relative_pos, bucket_size, max_position):
    sign = np.sign(relative_pos)
    mid = bucket_size // 2
    abs_pos = np.where((relative_pos < mid) & (relative_pos > -mid),
                       float(mid - 1), np.abs(relative_pos).astype(np.float64))
    log_pos = np.ceil(np.log(abs_pos / mid) /
                      np.log((max_position - 1) / mid) * (mid - 1)) + mid
    bucket_pos = np.where(abs_pos <= mid, relative_pos.astype(np.float64), log_pos * sign)
    return bucket_pos.astype(np.int64)


def build_relative_position(query_size, key_size, bucket_size, max_position):
    q_ids = np.arange(query_size)
    k_ids = np.arange(key_size)
    rel = q_ids[:, None] - k_ids[None, :]
    if bucket_size > 0 and max_position > 0:
        rel = make_log_bucket_position(rel, bucket_size, max_position)
    return rel.astype(np.int32)


# ----------------------------------------------------------------------------
# Parameter init (synthetic, deterministic; Wq|Wk|Wv fused into one weight)
# ----------------------------------------------------------------------------

def init_params(key, V, D, H, I, L, span):
    std = 0.02
    keys = jax.random.split(key, 2 + L)
    params = {
        "word_emb": jax.random.normal(keys[0], (V, D), jnp.float32) * std,
        "emb_ln_g": jnp.ones((D,), jnp.float32),
        "emb_ln_b": jnp.zeros((D,), jnp.float32),
        "rel_emb": jax.random.normal(keys[1], (2 * span, D), jnp.float32) * std,
        "rel_ln_g": jnp.ones((D,), jnp.float32),
        "rel_ln_b": jnp.zeros((D,), jnp.float32),
        "layers": [],
    }
    for l in range(L):
        lk = jax.random.split(keys[2 + l], 4)
        params["layers"].append({
            "Wqkv": jax.random.normal(lk[0], (D, 3 * D), jnp.float32) * std,
            "bqkv": jnp.zeros((3 * D,), jnp.float32),
            "Wo": jax.random.normal(lk[1], (D, D), jnp.float32) * std,
            "bo": jnp.zeros((D,), jnp.float32),
            "ln1_g": jnp.ones((D,), jnp.float32), "ln1_b": jnp.zeros((D,), jnp.float32),
            "Wi": jax.random.normal(lk[2], (D, I), jnp.float32) * std,
            "bi": jnp.zeros((I,), jnp.float32),
            "Wo2": jax.random.normal(lk[3], (I, D), jnp.float32) * std,
            "bo2": jnp.zeros((D,), jnp.float32),
            "ln2_g": jnp.ones((D,), jnp.float32), "ln2_b": jnp.zeros((D,), jnp.float32),
        })
    return params


# ----------------------------------------------------------------------------
# Forward (mirrors DebertaTextEncoder.forward after tokenization)
# ----------------------------------------------------------------------------

def deberta_forward(params, input_ids, *, H, att_span, max_rel_pos, pad_id, eps=1e-7):
    # TODO(synk): string tokenization (AutoTokenizer) has no Pallas/JAX equivalent;
    #             this wrapper consumes pre-tokenized integer ids.
    B, S = input_ids.shape
    D = params["word_emb"].shape[1]
    Dh = D // H
    L = len(params["layers"])
    inv_scale = 1.0 / float(np.sqrt(Dh * 3.0))   # scale_factor = 1 + len(["c2p","p2c"])

    mask = (input_ids != pad_id).astype(jnp.float32)          # (B, S)
    mask_col = mask.reshape(B * S, 1)
    mask_row3 = mask.reshape(B, 1, S)
    mask_col3 = mask.reshape(B, S, 1)

    # --- embeddings: word emb gather -> fused LayerNorm * mask ---
    emb = jnp.take(params["word_emb"], input_ids, axis=0).reshape(B * S, D)
    x = layernorm_mask(emb, params["emb_ln_g"], params["emb_ln_b"], mask_col, eps)
    x = x.reshape(B, S, D)

    # --- static relative-position selection tensors (host-side numpy) ---
    rel = build_relative_position(S, S, att_span, max_rel_pos)        # (S, S)
    two_span = 2 * att_span
    c2p_idx = np.clip(rel + att_span, 0, two_span - 1)
    p2c_idx = np.clip(-rel + att_span, 0, two_span - 1)
    m_ids = np.arange(two_span)[:, None, None]
    sel_c2p = jnp.asarray((c2p_idx[None] == m_ids).astype(np.float32))    # (2*span, S, S)
    sel_p2cT = jnp.asarray((p2c_idx.T[None] == m_ids).astype(np.float32))  # (2*span, S, S)

    # --- all layers' position projections in ONE fused LN+matmul kernel ---
    # (share_att_key=True: position keys/queries reuse each layer's Wq/Wk = Wqkv[:, :2D])
    wqk_all = jnp.concatenate([lp["Wqkv"][:, :2 * D] for lp in params["layers"]], axis=1)
    bqk_all = jnp.concatenate([lp["bqkv"][:2 * D] for lp in params["layers"]])
    pos_all = rel_pos_projection(params["rel_emb"], params["rel_ln_g"], params["rel_ln_b"],
                                 wqk_all, bqk_all, eps)                   # (2*span, L*2D)

    for l, lp in enumerate(params["layers"]):
        pos_l = pos_all[:, l * 2 * D:(l + 1) * 2 * D]                     # [pos_q | pos_k]
        x = attention_block(x, lp["Wqkv"], lp["bqkv"], pos_l, sel_c2p, sel_p2cT,
                            mask_row3, mask_col3, lp["Wo"], lp["bo"],
                            lp["ln1_g"], lp["ln1_b"],
                            heads=H, inv_scale=inv_scale, eps=eps)
        x2 = ffn_block(x.reshape(B * S, D), lp["Wi"], lp["bi"], lp["Wo2"], lp["bo2"],
                       lp["ln2_g"], lp["ln2_b"], eps)
        x = x2.reshape(B, S, D)

    # masked mean pooling:  (emb * mask).sum(1) / mask.sum(1)
    return masked_mean_pool(x, mask)


# ----------------------------------------------------------------------------
# Demo
# ----------------------------------------------------------------------------

if __name__ == "__main__":
    V, D, H, I, L = 100, 32, 4, 64, 2      # scaled-down DeBERTa-v3 config
    B, S = 2, 8
    span = 4                               # position_buckets
    max_rel = 16                           # max_position_embeddings
    pad_id = 0

    root = jax.random.PRNGKey(0)
    k_params, k_ids = jax.random.split(root)
    params = init_params(k_params, V, D, H, I, L, span)

    input_ids = jax.random.randint(k_ids, (B, S), 1, V, dtype=jnp.int32)
    input_ids = input_ids.at[0, 6:].set(pad_id)   # padding to exercise the mask

    out = deberta_forward(params, input_ids, H=H, att_span=span,
                          max_rel_pos=max_rel, pad_id=pad_id, eps=1e-7)
    out = jax.block_until_ready(out)

    assert out.shape == (B, D), out.shape
    assert bool(jnp.all(jnp.isfinite(out)))
    print("KERNEL_OK")
</pallas_src>

<mosaic_0001>
module attributes {stable_mosaic.version = 11 : i64} {
  func.func @_ln_mask_kernel(%arg0: i32, %arg1: memref<16x32xf32, #tpu.memory_space<vmem>>, %arg2: memref<1x32xf32, #tpu.memory_space<vmem>>, %arg3: memref<1x32xf32, #tpu.memory_space<vmem>>, %arg4: memref<16x1xf32, #tpu.memory_space<vmem>>, %arg5: memref<16x32xf32, #tpu.memory_space<vmem>>) attributes {dimension_semantics = [#tpu.dimension_semantics<parallel>], iteration_bounds = array<i64: 1>, scalar_prefetch = 0 : i64, scratch_operands = 0 : i64, tpu.core_type = #tpu.core_type<tc>, window_params = [{transform_indices = @transform_0, window_bounds = array<i64: 16, 32>}, {pipeline_mode = #tpu.pipeline_mode<synchronous>, transform_indices = @transform_1, window_bounds = array<i64: 1, 32>}, {pipeline_mode = #tpu.pipeline_mode<synchronous>, transform_indices = @transform_2, window_bounds = array<i64: 1, 32>}, {transform_indices = @transform_3, window_bounds = array<i64: 16, 1>}, {transform_indices = @transform_4, window_bounds = array<i64: 16, 32>}]} {
    %c0 = arith.constant 0 : index
    %c0_0 = arith.constant 0 : index
    %0 = vector.load %arg1[%c0, %c0_0] : memref<16x32xf32, #tpu.memory_space<vmem>>, vector<16x32xf32>
    %c0_1 = arith.constant 0 : index
    %c0_2 = arith.constant 0 : index
    %1 = vector.load %arg2[%c0_1, %c0_2] : memref<1x32xf32, #tpu.memory_space<vmem>>, vector<1x32xf32>
    %c0_3 = arith.constant 0 : index
    %c0_4 = arith.constant 0 : index
    %2 = vector.load %arg3[%c0_3, %c0_4] : memref<1x32xf32, #tpu.memory_space<vmem>>, vector<1x32xf32>
    %cst = arith.constant dense<0.000000e+00> : vector<16xf32>
    %3 = vector.multi_reduction <add>, %0, %cst [1] : vector<16x32xf32> to vector<16xf32>
    %4 = vector.shape_cast %3 : vector<16xf32> to vector<16x1xf32>
    %cst_5 = arith.constant 3.200000e+01 : f32
    %5 = vector.broadcast %cst_5 : f32 to vector<16x1xf32>
    %6 = arith.divf %4, %5 : vector<16x1xf32>
    %7 = vector.broadcast %6 : vector<16x1xf32> to vector<16x32xf32>
    %8 = arith.subf %0, %7 : vector<16x32xf32>
    %9 = arith.mulf %8, %8 : vector<16x32xf32>
    %cst_6 = arith.constant dense<0.000000e+00> : vector<16xf32>
    %10 = vector.multi_reduction <add>, %9, %cst_6 [1] : vector<16x32xf32> to vector<16xf32>
    %11 = vector.shape_cast %10 : vector<16xf32> to vector<16x1xf32>
    %cst_7 = arith.constant 3.200000e+01 : f32
    %12 = vector.broadcast %cst_7 : f32 to vector<16x1xf32>
    %13 = arith.divf %11, %12 : vector<16x1xf32>
    %14 = vector.broadcast %6 : vector<16x1xf32> to vector<16x32xf32>
    %15 = arith.subf %0, %14 : vector<16x32xf32>
    %cst_8 = arith.constant 1.000000e-07 : f32
    %16 = vector.broadcast %cst_8 : f32 to vector<16x1xf32>
    %17 = arith.addf %13, %16 : vector<16x1xf32>
    %18 = math.rsqrt %17 : vector<16x1xf32>
    %19 = vector.broadcast %18 : vector<16x1xf32> to vector<16x32xf32>
    %20 = arith.mulf %15, %19 : vector<16x32xf32>
    %21 = vector.broadcast %1 : vector<1x32xf32> to vector<16x32xf32>
    %22 = arith.mulf %20, %21 : vector<16x32xf32>
    %23 = vector.broadcast %2 : vector<1x32xf32> to vector<16x32xf32>
    %24 = arith.addf %22, %23 : vector<16x32xf32>
    %c0_9 = arith.constant 0 : index
    %c0_10 = arith.constant 0 : index
    %25 = vector.load %arg4[%c0_9, %c0_10] : memref<16x1xf32, #tpu.memory_space<vmem>>, vector<16x1xf32>
    %26 = vector.broadcast %25 : vector<16x1xf32> to vector<16x32xf32>
    %27 = arith.mulf %24, %26 : vector<16x32xf32>
    %c0_11 = arith.constant 0 : index
    %c0_12 = arith.constant 0 : index
    %28 = vector.load %arg5[%c0_11, %c0_12] : memref<16x32xf32, #tpu.memory_space<vmem>>, vector<16x32xf32>
    tpu.vector_store %arg5[%c0_11, %c0_12], %27 {strides = array<i32>} : memref<16x32xf32, #tpu.memory_space<vmem>>, vector<16x32xf32>,
    return
  }
  func.func @transform_0(%arg0: i32) -> (i32, i32) {
    %c0_i32 = arith.constant 0 : i32
    %c0_i32_0 = arith.constant 0 : i32
    return %arg0, %c0_i32 : i32, i32
  }
  func.func @transform_1(%arg0: i32) -> (i32, i32) {
    %c0_i32 = arith.constant 0 : i32
    %c0_i32_0 = arith.constant 0 : i32
    %c0_i32_1 = arith.constant 0 : i32
    return %c0_i32, %c0_i32_0 : i32, i32
  }
  func.func @transform_2(%arg0: i32) -> (i32, i32) {
    %c0_i32 = arith.constant 0 : i32
    %c0_i32_0 = arith.constant 0 : i32
    %c0_i32_1 = arith.constant 0 : i32
    return %c0_i32, %c0_i32_0 : i32, i32
  }
  func.func @transform_3(%arg0: i32) -> (i32, i32) {
    %c0_i32 = arith.constant 0 : i32
    %c0_i32_0 = arith.constant 0 : i32
    return %arg0, %c0_i32 : i32, i32
  }
  func.func @transform_4(%arg0: i32) -> (i32, i32) {
    %c0_i32 = arith.constant 0 : i32
    %c0_i32_0 = arith.constant 0 : i32
    return %arg0, %c0_i32 : i32, i32
  }
}

</mosaic_0001>

<llo_original>
// kernel: tpu_custom_call.1
$region0: #{tpu_custom_call.1}
  #allocation0 [shape = 'u32[]', space=smem, size = 0x4, offset = 0x4, fixed_abs, tag = 'smem constant byte address 0x4 - core index']
  #allocation1 [shape = 'u32[144,128]{1,0:T(1,128)}', space=vmem, size = 0x12000, scoped, tag = 'internal scratch']
  %s0 = inlined_call_operand.vmem [shape: f32[16,32], index: 0, kind: input, shape index: {}]
  %s1 = inlined_call_operand.vmem [shape: f32[1,32], index: 1, kind: input, shape index: {}]
  %s2 = inlined_call_operand.vmem [shape: f32[1,32], index: 2, kind: input, shape index: {}]
  %s3 = inlined_call_operand.vmem [shape: f32[16,1], index: 3, kind: input, shape index: {}]
  %s4 = inlined_call_operand.hbm [shape: f32[16,32], index: 4, kind: output, shape index: {}]
  %s5 = sld [smem:[#allocation0]]
  $region26: #{tpu_custom_call.1} parent=0
    _
  %s7 = ssub.s32 1, %s5
  %s8 = scalar_select 0, %s7, %s5
  $region1: #{tpu_custom_call.1} parent=0
    #allocation2 [shape = 'u8[8192]{0}', space=vmem, size = 0x2000, scoped, tag = 'output window, operand 0, single buffered']
    #allocation3 [shape = 's32[1]{0}', space=sflag, size = 0x4, scoped, tag = 'scoped memory for tpu_custom_call.1']
    %9 = vsyncpa [#allocation3], 0
    // Predicated region
    $region2: #{tpu_custom_call.1} parent=1 // pred_check
      _
    $region3: #{tpu_custom_call.1} parent=1 // pred_check_branch
      %11 = sbr.rel (0) target = $region5
    $region4: #{tpu_custom_call.1} parent=1 // pred_region
      _
    $region5: #{tpu_custom_call.1} parent=1 // pred_fallthru
      _
    // Predicated region
    $region6: #{tpu_custom_call.1} parent=1 // pred_check
      _
    $region7: #{tpu_custom_call.1} parent=1 // pred_check_branch
      %13 = sbr.rel (0) target = $region9
    $region8: #{tpu_custom_call.1} parent=1 // pred_region
      _
    $region9: #{tpu_custom_call.1} parent=1 // pred_fallthru
      _
    // Predicated region
    $region10: #{tpu_custom_call.1} parent=1 // pred_check
      _
    $region11: #{tpu_custom_call.1} parent=1 // pred_check_branch
      %15 = sbr.rel (0) target = $region13
    $region12: #{tpu_custom_call.1} parent=1 // pred_region
      _
    $region13: #{tpu_custom_call.1} parent=1 // pred_fallthru
      _
    // Predicated region
    $region14: #{tpu_custom_call.1} parent=1 // pred_check
      _
    $region15: #{tpu_custom_call.1} parent=1 // pred_check_branch
      %17 = sbr.rel (0) target = $region17
    $region16: #{tpu_custom_call.1} parent=1 // pred_region
      _
    $region17: #{tpu_custom_call.1} parent=1 // pred_fallthru
      _
    %v18 = vld [vmem:[%s0] sm:$0xff]
    %v19 = vld [vmem:[%s0 + $0x8] sm:$0xff]
    %v20 = vld [vmem:[%s1] sm:$0x1]
    %v21 = vld [vmem:[%s2] sm:$0x1]
    %vm22 = vcmask 261120
    %v23 = vsel %vm22, %v18, 0.0
    %24 = vadd.xlane.f32.xlu0 %v23
    %v25 = vpop.xlane.xlu0 %24
    %v26 = vsel %vm22, %v19, 0.0
    %27 = vadd.xlane.f32.xlu0 %v26
    %v28 = vpop.xlane.xlu0 %27
    %v29 = vrcp.pop 32.0
    %v30 = vmul.f32 %v25, %v29
    %v31 = vmul.f32 %v28, %v29
    %v32 = vsub.f32 %v18, %v30
    %v33 = vsub.f32 %v19, %v31
    %v34 = vmul.f32 %v32, %v32
    %v35 = vmul.f32 %v33, %v33
    %v36 = vsel %vm22, %v34, 0.0
    %37 = vadd.xlane.f32.xlu0 %v36
    %v38 = vpop.xlane.xlu0 %37
    %v39 = vsel %vm22, %v35, 0.0
    %40 = vadd.xlane.f32.xlu0 %v39
    %v41 = vpop.xlane.xlu0 %40
    %v42 = vmul.f32 %v38, %v29
    %v43 = vmul.f32 %v41, %v29
    %v44 = vadd.f32 %v42, 1e-07
    %v45 = vadd.f32 %v43, 1e-07
    %v46 = vrsqrt.pop %v44
    %v47 = vrsqrt.pop %v45
    %v48 = vmul.f32 %v32, %v46
    %v49 = vmul.f32 %v33, %v47
    %v51 = vlaneseq
    %v52 = vshrl.u32 %v51, 7
    %v53 = vsub.s32 0, %v52
    %v54 = vrot.slane %v20, %v53
    %v56 = vmul.f32 %v48, %v54
    %v57 = vmul.f32 %v49, %v54
    %v59 = vlaneseq
    %v60 = vshrl.u32 %v59, 7
    %v61 = vsub.s32 0, %v60
    %v62 = vrot.slane %v21, %v61
    %v64 = vadd.f32 %v56, %v62
    %v65 = vadd.f32 %v57, %v62
    %v66 = vld [vmem:[%s3] sm:$0xff]
    %v67 = vld [vmem:[%s3 + $0x8] sm:$0xff]
    %69 = vset.pattern.permute.xlu0 0
    %70 = vperm.xlu0 %69, %v66
    %v71 = vpop.permute.xlu0 %70
    %74 = vset.pattern.permute.xlu0 0
    %75 = vperm.xlu0 %74, %v67
    %v76 = vpop.permute.xlu0 %75
    %v78 = vmul.f32 %v64, %v71
    %v79 = vmul.f32 %v65, %v76
    %80 = vst.msk [vmem:[#allocation2] sm:$0xff] %vm22, %v78
    %81 = vst.msk [vmem:[#allocation2 + $0x8] sm:$0xff] %vm22, %v79
    // Predicated region
    $region18: #{tpu_custom_call.1} parent=1 // pred_check
      _
    $region19: #{tpu_custom_call.1} parent=1 // pred_check_branch
      %83 = sbr.rel (0) target = $region21
    $region20: #{tpu_custom_call.1} parent=1 // pred_region
      %s85 = ssub.s32 256, 256
      %86 = vsyncadd [#allocation3], %s85
      %s87 = sshll.u32 [#allocation2], 4
      %s88 = int_to_ptr.vmem [resolvable:$true] %s87
      %93 = dma.vmem_to_hbm [thread:$0]  %s88, 256, %s4, [#allocation3], 128, 128, 8
    $region21: #{tpu_custom_call.1} parent=1 // pred_fallthru
      _
    // Predicated region
    $region22: #{tpu_custom_call.1} parent=1 // pred_check
      _
    $region23: #{tpu_custom_call.1} parent=1 // pred_check_branch
      %95 = sbr.rel (0) target = $region25
    $region24: #{tpu_custom_call.1} parent=1 // pred_region
      %96 = dma.done [#allocation3], 256
    $region25: #{tpu_custom_call.1} parent=1 // pred_fallthru
      _
    %97 = vsyncpa [#allocation3], 1

</llo_original>
